<compile_context>
chip_gen: v5e
topology: v5e:2x2
jax: 0.10.0
libtpu: 0.0.40
codegen_flags: <defaults>
</compile_context>

<pallas_src>
import jax
import jax.numpy as jnp
from jax import lax
from jax.experimental import pallas as pl
from jax.experimental.pallas import tpu as pltpu

EPS = 1e-5
OUT_PAD = 128                       # lane-dense classifier output width
LAYER_WIDTHS = (256, 128, 64, 64)   # true hidden widths of the 4 blocks

# Row offsets of the stacked (640, 128) bf16 weight slab (all multiples of 16,
# i.e. bf16 sublane-tile aligned -> static slices are views, no VMEM copies).
W2_OFF, W3_OFF, W4_OFF, WC_OFF, WBIG_ROWS = 0, 256, 384, 512, 640


def _net_kernel(x_ref, w1_ref, wbig_hbm, gb_ref, o_ref, wbig_vmem, sem):
    # Kick off the HBM->VMEM copy of the layer-2..classifier weight slab so it
    # overlaps with the layer-1 matmul + BN below.
    cp = pltpu.make_async_copy(wbig_hbm, wbig_vmem, sem)
    cp.start()

    gb = gb_ref[...]  # (16, 256) f32: rows 2i/2i+1 = gamma_i/beta_i, row 8 = bc

    def bn_relu(y, row, width):
        # Fused training-mode BatchNorm1d (batch stats) + ReLU, one reduction
        # pass:  scale = g*rsqrt(var+eps), shift = beta - mean*scale.
        mean = jnp.mean(y, axis=0, keepdims=True)
        mean_sq = jnp.mean(y * y, axis=0, keepdims=True)
        var = jnp.maximum(mean_sq - mean * mean, 0.0)   # cancellation guard
        gamma = gb[row:row + 1, :width]
        beta = gb[row + 1:row + 2, :width]
        scale = gamma * lax.rsqrt(var + EPS)
        shift = beta - mean * scale
        return jnp.maximum(y * scale + shift, 0.0)

    # ---- Layer 1 (uses the small auto-DMA'd w1 slab) -----------------------
    y = jnp.dot(x_ref[...].astype(jnp.bfloat16), w1_ref[...],
                preferred_element_type=jnp.float32)
    h = bn_relu(y, 0, 256)

    cp.wait()  # w2/w3/w4/wc slab now resident in VMEM

    # ---- Layers 2..4 (lane-dense 128-wide, padded cols stay exactly 0) -----
    for r0, r1, row in ((W2_OFF, W3_OFF, 2), (W3_OFF, W4_OFF, 4), (W4_OFF, WC_OFF, 6)):
        y = jnp.dot(h.astype(jnp.bfloat16), wbig_vmem[r0:r1, :],
                    preferred_element_type=jnp.float32)
        h = bn_relu(y, row, 128)

    # ---- Classifier (no BN/ReLU); 128-lane padded -> unmasked stores -------
    o_ref[...] = (jnp.dot(h.astype(jnp.bfloat16), wbig_vmem[WC_OFF:WBIG_ROWS, :],
                          preferred_element_type=jnp.float32)
                  + gb[8:9, :OUT_PAD])


def pack_params(p, dim_out):
    """Repack PyTorch-layout params into the kernel's fused/packed layout."""
    # (16, 256) f32 slab: gamma/beta per layer + classifier bias (row 8).
    gb = jnp.zeros((16, 256), jnp.float32)
    for i, w in enumerate(LAYER_WIDTHS):
        gb = gb.at[2 * i, :w].set(p[f"g{i + 1}"].reshape(w))
        gb = gb.at[2 * i + 1, :w].set(p[f"be{i + 1}"].reshape(w))
    gb = gb.at[8, :dim_out].set(p["bc"].reshape(dim_out))

    def pad(w, rows, cols):
        out = jnp.zeros((rows, cols), jnp.float32)
        return out.at[:w.shape[0], :w.shape[1]].set(w)

    # Stacked 128-lane bf16 slab: w2 / w3(pad) / w4(pad) / wc(pad).
    wbig = jnp.concatenate(
        [pad(p["w2"], 256, 128), pad(p["w3"], 128, 128),
         pad(p["w4"], 128, 128), pad(p["wc"], 128, 128)],
        axis=0).astype(jnp.bfloat16)                       # (640, 128)

    return {
        "w1": p["w1"].astype(jnp.bfloat16),                # (dim_in, 256)
        "wbig": wbig,                                      # (640, 128)
        "gb": gb,                                          # (16, 256) f32
        # NOTE: b1..b4 intentionally dropped (exactly cancelled by BN mean).
    }


def net_forward(x, packed, dim_out):
    """x: (B, dim_in) f32.  packed: output of pack_params.  -> (B, dim_out)."""
    B = x.shape[0]
    vmem = pl.BlockSpec(memory_space=pltpu.MemorySpace.VMEM)
    out = pl.pallas_call(
        _net_kernel,
        out_shape=jax.ShapeDtypeStruct((B, OUT_PAD), jnp.float32),
        in_specs=[vmem,                                  # x
                  vmem,                                  # w1 (auto-DMA)
                  pl.BlockSpec(memory_space=pl.ANY),     # wbig (manual DMA)
                  vmem],                                 # gb slab
        out_specs=vmem,
        scratch_shapes=[pltpu.VMEM((WBIG_ROWS, 128), jnp.bfloat16),
                        pltpu.SemaphoreType.DMA(())],
    )(x, packed["w1"], packed["wbig"], packed["gb"])
    return out[:, :dim_out]


def init_params(key, dim_in, dim_out):
    """PyTorch-layout params (Linear weights stored transposed: (in, out)).
    Linear weights ~ N(0, 0.01); pre-BN biases made non-zero on purpose so the
    reference check demonstrates that they cancel exactly under batch-norm."""
    dims = [(dim_in, 256), (256, 128), (128, 64), (64, 64)]
    params = {}
    keys = jax.random.split(key, 10)
    for i, (din, dout) in enumerate(dims, start=1):
        params[f"w{i}"] = 0.01 * jax.random.normal(keys[2 * (i - 1)], (din, dout), jnp.float32)
        params[f"b{i}"] = 0.1 * jax.random.normal(keys[2 * (i - 1) + 1], (1, dout), jnp.float32)
        params[f"g{i}"] = jnp.ones((1, dout), jnp.float32)    # BN weight
        params[f"be{i}"] = jnp.zeros((1, dout), jnp.float32)  # BN bias
    params["wc"] = 0.01 * jax.random.normal(keys[8], (64, dim_out), jnp.float32)
    params["bc"] = 0.01 * jax.random.normal(keys[9], (1, dim_out), jnp.float32)
    return params


def _reference(x, p):
    """Pure-JAX f32 reference mirroring the PyTorch module (biases included)."""
    h = x
    for i in range(1, 5):
        y = h @ p[f"w{i}"] + p[f"b{i}"]
        mean = jnp.mean(y, axis=0, keepdims=True)
        var = jnp.mean((y - mean) ** 2, axis=0, keepdims=True)
        y = (y - mean) / jnp.sqrt(var + EPS) * p[f"g{i}"] + p[f"be{i}"]
        h = jnp.maximum(y, 0.0)
    return h @ p["wc"] + p["bc"]


if __name__ == "__main__":
    B, dim_in, dim_out = 8, 32, 10
    key = jax.random.PRNGKey(0)
    kx, kp = jax.random.split(key)
    x = jax.random.normal(kx, (B, dim_in), jnp.float32)
    params = init_params(kp, dim_in, dim_out)
    packed = pack_params(params, dim_out)

    out = net_forward(x, packed, dim_out)
    jax.block_until_ready(out)

    ref = _reference(x, params)
    assert out.shape == (B, dim_out)
    # bf16 matmul operands (f32 accumulation) vs. f32 reference -> loose tol.
    assert jnp.allclose(out, ref, atol=2e-2, rtol=2e-2), "mismatch vs reference"
    print("KERNEL_OK")
</pallas_src>

<mosaic_0001>
module attributes {stable_mosaic.version = 11 : i64} {
  func.func @_net_kernel(%arg0: memref<8x32xf32, #tpu.memory_space<vmem>>, %arg1: memref<32x256xbf16, #tpu.memory_space<vmem>>, %arg2: memref<640x128xbf16, #tpu.memory_space<any>>, %arg3: memref<16x256xf32, #tpu.memory_space<vmem>>, %arg4: memref<8x128xf32, #tpu.memory_space<vmem>>, %arg5: memref<640x128xbf16, #tpu.memory_space<vmem>>, %arg6: memref<!tpu.dma_semaphore, #tpu.memory_space<semaphore_mem>>) attributes {dimension_semantics = [], scalar_prefetch = 0 : i64, scratch_operands = 2 : i64, tpu.core_type = #tpu.core_type<tc>} {
    tpu.enqueue_dma source(%arg2 : memref<640x128xbf16, #tpu.memory_space<any>>) target(%arg5 : memref<640x128xbf16, #tpu.memory_space<vmem>>) target_semaphore(%arg6 : memref<!tpu.dma_semaphore, #tpu.memory_space<semaphore_mem>>)
    %c0 = arith.constant 0 : index
    %c0_0 = arith.constant 0 : index
    %0 = vector.load %arg3[%c0, %c0_0] : memref<16x256xf32, #tpu.memory_space<vmem>>, vector<16x256xf32>
    %c0_1 = arith.constant 0 : index
    %c0_2 = arith.constant 0 : index
    %1 = vector.load %arg0[%c0_1, %c0_2] : memref<8x32xf32, #tpu.memory_space<vmem>>, vector<8x32xf32>
    %2 = arith.truncf %1 : vector<8x32xf32> to vector<8x32xbf16>
    %c0_3 = arith.constant 0 : index
    %c0_4 = arith.constant 0 : index
    %3 = vector.load %arg1[%c0_3, %c0_4] : memref<32x256xbf16, #tpu.memory_space<vmem>>, vector<32x256xbf16>
    %cst = arith.constant dense<0.000000e+00> : vector<8x256xf32>
    %4 = tpu.matmul %2, %3, %cst {dimension_numbers = #tpu.dot_dimension_numbers<[1], [0], [0], [1], [0, 0, 1, 1], [], []>} : vector<8x32xbf16>, vector<32x256xbf16>, vector<8x256xf32> -> vector<8x256xf32>
    %cst_5 = arith.constant dense<0.000000e+00> : vector<256xf32>
    %5 = vector.multi_reduction <add>, %4, %cst_5 [0] : vector<8x256xf32> to vector<256xf32>
    %6 = vector.shape_cast %5 : vector<256xf32> to vector<1x256xf32>
    %cst_6 = arith.constant 8.000000e+00 : f32
    %7 = vector.broadcast %cst_6 : f32 to vector<1x256xf32>
    %8 = arith.divf %6, %7 : vector<1x256xf32>
    %9 = arith.mulf %4, %4 : vector<8x256xf32>
    %cst_7 = arith.constant dense<0.000000e+00> : vector<256xf32>
    %10 = vector.multi_reduction <add>, %9, %cst_7 [0] : vector<8x256xf32> to vector<256xf32>
    %11 = vector.shape_cast %10 : vector<256xf32> to vector<1x256xf32>
    %cst_8 = arith.constant 8.000000e+00 : f32
    %12 = vector.broadcast %cst_8 : f32 to vector<1x256xf32>
    %13 = arith.divf %11, %12 : vector<1x256xf32>
    %14 = arith.mulf %8, %8 : vector<1x256xf32>
    %15 = arith.subf %13, %14 : vector<1x256xf32>
    %cst_9 = arith.constant 0.000000e+00 : f32
    %16 = vector.broadcast %cst_9 : f32 to vector<1x256xf32>
    %17 = arith.maximumf %15, %16 : vector<1x256xf32>
    %18 = vector.extract_strided_slice %0 {offsets = [0, 0], sizes = [1, 256], strides = [1, 1]} : vector<16x256xf32> to vector<1x256xf32>
    %19 = vector.extract_strided_slice %0 {offsets = [1, 0], sizes = [1, 256], strides = [1, 1]} : vector<16x256xf32> to vector<1x256xf32>
    %cst_10 = arith.constant 9.99999974E-6 : f32
    %20 = vector.broadcast %cst_10 : f32 to vector<1x256xf32>
    %21 = arith.addf %17, %20 : vector<1x256xf32>
    %22 = math.rsqrt %21 : vector<1x256xf32>
    %23 = arith.mulf %18, %22 : vector<1x256xf32>
    %24 = arith.mulf %8, %23 : vector<1x256xf32>
    %25 = arith.subf %19, %24 : vector<1x256xf32>
    %26 = vector.broadcast %23 : vector<1x256xf32> to vector<8x256xf32>
    %27 = arith.mulf %4, %26 : vector<8x256xf32>
    %28 = vector.broadcast %25 : vector<1x256xf32> to vector<8x256xf32>
    %29 = arith.addf %27, %28 : vector<8x256xf32>
    %cst_11 = arith.constant 0.000000e+00 : f32
    %30 = vector.broadcast %cst_11 : f32 to vector<8x256xf32>
    %31 = arith.maximumf %29, %30 : vector<8x256xf32>
    tpu.wait_dma2 semaphore(%arg6 : memref<!tpu.dma_semaphore, #tpu.memory_space<semaphore_mem>>) src(%arg2 : memref<640x128xbf16, #tpu.memory_space<any>>) dst(%arg5 : memref<640x128xbf16, #tpu.memory_space<vmem>>)
    %32 = arith.truncf %31 : vector<8x256xf32> to vector<8x256xbf16>
    %c0_12 = arith.constant 0 : index
    %c0_13 = arith.constant 0 : index
    %33 = vector.load %arg5[%c0_12, %c0_13] : memref<640x128xbf16, #tpu.memory_space<vmem>>, vector<256x128xbf16>
    %cst_14 = arith.constant dense<0.000000e+00> : vector<8x128xf32>
    %34 = tpu.matmul %32, %33, %cst_14 {dimension_numbers = #tpu.dot_dimension_numbers<[1], [0], [0], [1], [0, 0, 1, 1], [], []>} : vector<8x256xbf16>, vector<256x128xbf16>, vector<8x128xf32> -> vector<8x128xf32>
    %cst_15 = arith.constant dense<0.000000e+00> : vector<128xf32>
    %35 = vector.multi_reduction <add>, %34, %cst_15 [0] : vector<8x128xf32> to vector<128xf32>
    %36 = vector.shape_cast %35 : vector<128xf32> to vector<1x128xf32>
    %cst_16 = arith.constant 8.000000e+00 : f32
    %37 = vector.broadcast %cst_16 : f32 to vector<1x128xf32>
    %38 = arith.divf %36, %37 : vector<1x128xf32>
    %39 = arith.mulf %34, %34 : vector<8x128xf32>
    %cst_17 = arith.constant dense<0.000000e+00> : vector<128xf32>
    %40 = vector.multi_reduction <add>, %39, %cst_17 [0] : vector<8x128xf32> to vector<128xf32>
    %41 = vector.shape_cast %40 : vector<128xf32> to vector<1x128xf32>
    %cst_18 = arith.constant 8.000000e+00 : f32
    %42 = vector.broadcast %cst_18 : f32 to vector<1x128xf32>
    %43 = arith.divf %41, %42 : vector<1x128xf32>
    %44 = arith.mulf %38, %38 : vector<1x128xf32>
    %45 = arith.subf %43, %44 : vector<1x128xf32>
    %cst_19 = arith.constant 0.000000e+00 : f32
    %46 = vector.broadcast %cst_19 : f32 to vector<1x128xf32>
    %47 = arith.maximumf %45, %46 : vector<1x128xf32>
    %48 = vector.extract_strided_slice %0 {offsets = [2, 0], sizes = [1, 128], strides = [1, 1]} : vector<16x256xf32> to vector<1x128xf32>
    %49 = vector.extract_strided_slice %0 {offsets = [3, 0], sizes = [1, 128], strides = [1, 1]} : vector<16x256xf32> to vector<1x128xf32>
    %cst_20 = arith.constant 9.99999974E-6 : f32
    %50 = vector.broadcast %cst_20 : f32 to vector<1x128xf32>
    %51 = arith.addf %47, %50 : vector<1x128xf32>
    %52 = math.rsqrt %51 : vector<1x128xf32>
    %53 = arith.mulf %48, %52 : vector<1x128xf32>
    %54 = arith.mulf %38, %53 : vector<1x128xf32>
    %55 = arith.subf %49, %54 : vector<1x128xf32>
    %56 = vector.broadcast %53 : vector<1x128xf32> to vector<8x128xf32>
    %57 = arith.mulf %34, %56 : vector<8x128xf32>
    %58 = vector.broadcast %55 : vector<1x128xf32> to vector<8x128xf32>
    %59 = arith.addf %57, %58 : vector<8x128xf32>
    %cst_21 = arith.constant 0.000000e+00 : f32
    %60 = vector.broadcast %cst_21 : f32 to vector<8x128xf32>
    %61 = arith.maximumf %59, %60 : vector<8x128xf32>
    %62 = arith.truncf %61 : vector<8x128xf32> to vector<8x128xbf16>
    %c256 = arith.constant 256 : index
    %c0_22 = arith.constant 0 : index
    %63 = vector.load %arg5[%c256, %c0_22] : memref<640x128xbf16, #tpu.memory_space<vmem>>, vector<128x128xbf16>
    %cst_23 = arith.constant dense<0.000000e+00> : vector<8x128xf32>
    %64 = tpu.matmul %62, %63, %cst_23 {dimension_numbers = #tpu.dot_dimension_numbers<[1], [0], [0], [1], [0, 0, 1, 1], [], []>} : vector<8x128xbf16>, vector<128x128xbf16>, vector<8x128xf32> -> vector<8x128xf32>
    %cst_24 = arith.constant dense<0.000000e+00> : vector<128xf32>
    %65 = vector.multi_reduction <add>, %64, %cst_24 [0] : vector<8x128xf32> to vector<128xf32>
    %66 = vector.shape_cast %65 : vector<128xf32> to vector<1x128xf32>
    %cst_25 = arith.constant 8.000000e+00 : f32
    %67 = vector.broadcast %cst_25 : f32 to vector<1x128xf32>
    %68 = arith.divf %66, %67 : vector<1x128xf32>
    %69 = arith.mulf %64, %64 : vector<8x128xf32>
    %cst_26 = arith.constant dense<0.000000e+00> : vector<128xf32>
    %70 = vector.multi_reduction <add>, %69, %cst_26 [0] : vector<8x128xf32> to vector<128xf32>
    %71 = vector.shape_cast %70 : vector<128xf32> to vector<1x128xf32>
    %cst_27 = arith.constant 8.000000e+00 : f32
    %72 = vector.broadcast %cst_27 : f32 to vector<1x128xf32>
    %73 = arith.divf %71, %72 : vector<1x128xf32>
    %74 = arith.mulf %68, %68 : vector<1x128xf32>
    %75 = arith.subf %73, %74 : vector<1x128xf32>
    %cst_28 = arith.constant 0.000000e+00 : f32
    %76 = vector.broadcast %cst_28 : f32 to vector<1x128xf32>
    %77 = arith.maximumf %75, %76 : vector<1x128xf32>
    %78 = vector.extract_strided_slice %0 {offsets = [4, 0], sizes = [1, 128], strides = [1, 1]} : vector<16x256xf32> to vector<1x128xf32>
    %79 = vector.extract_strided_slice %0 {offsets = [5, 0], sizes = [1, 128], strides = [1, 1]} : vector<16x256xf32> to vector<1x128xf32>
    %cst_29 = arith.constant 9.99999974E-6 : f32
    %80 = vector.broadcast %cst_29 : f32 to vector<1x128xf32>
    %81 = arith.addf %77, %80 : vector<1x128xf32>
    %82 = math.rsqrt %81 : vector<1x128xf32>
    %83 = arith.mulf %78, %82 : vector<1x128xf32>
    %84 = arith.mulf %68, %83 : vector<1x128xf32>
    %85 = arith.subf %79, %84 : vector<1x128xf32>
    %86 = vector.broadcast %83 : vector<1x128xf32> to vector<8x128xf32>
    %87 = arith.mulf %64, %86 : vector<8x128xf32>
    %88 = vector.broadcast %85 : vector<1x128xf32> to vector<8x128xf32>
    %89 = arith.addf %87, %88 : vector<8x128xf32>
    %cst_30 = arith.constant 0.000000e+00 : f32
    %90 = vector.broadcast %cst_30 : f32 to vector<8x128xf32>
    %91 = arith.maximumf %89, %90 : vector<8x128xf32>
    %92 = arith.truncf %91 : vector<8x128xf32> to vector<8x128xbf16>
    %c384 = arith.constant 384 : index
    %c0_31 = arith.constant 0 : index
    %93 = vector.load %arg5[%c384, %c0_31] : memref<640x128xbf16, #tpu.memory_space<vmem>>, vector<128x128xbf16>
    %cst_32 = arith.constant dense<0.000000e+00> : vector<8x128xf32>
    %94 = tpu.matmul %92, %93, %cst_32 {dimension_numbers = #tpu.dot_dimension_numbers<[1], [0], [0], [1], [0, 0, 1, 1], [], []>} : vector<8x128xbf16>, vector<128x128xbf16>, vector<8x128xf32> -> vector<8x128xf32>
    %cst_33 = arith.constant dense<0.000000e+00> : vector<128xf32>
    %95 = vector.multi_reduction <add>, %94, %cst_33 [0] : vector<8x128xf32> to vector<128xf32>
    %96 = vector.shape_cast %95 : vector<128xf32> to vector<1x128xf32>
    %cst_34 = arith.constant 8.000000e+00 : f32
    %97 = vector.broadcast %cst_34 : f32 to vector<1x128xf32>
    %98 = arith.divf %96, %97 : vector<1x128xf32>
    %99 = arith.mulf %94, %94 : vector<8x128xf32>
    %cst_35 = arith.constant dense<0.000000e+00> : vector<128xf32>
    %100 = vector.multi_reduction <add>, %99, %cst_35 [0] : vector<8x128xf32> to vector<128xf32>
    %101 = vector.shape_cast %100 : vector<128xf32> to vector<1x128xf32>
    %cst_36 = arith.constant 8.000000e+00 : f32
    %102 = vector.broadcast %cst_36 : f32 to vector<1x128xf32>
    %103 = arith.divf %101, %102 : vector<1x128xf32>
    %104 = arith.mulf %98, %98 : vector<1x128xf32>
    %105 = arith.subf %103, %104 : vector<1x128xf32>
    %cst_37 = arith.constant 0.000000e+00 : f32
    %106 = vector.broadcast %cst_37 : f32 to vector<1x128xf32>
    %107 = arith.maximumf %105, %106 : vector<1x128xf32>
    %108 = vector.extract_strided_slice %0 {offsets = [6, 0], sizes = [1, 128], strides = [1, 1]} : vector<16x256xf32> to vector<1x128xf32>
    %109 = vector.extract_strided_slice %0 {offsets = [7, 0], sizes = [1, 128], strides = [1, 1]} : vector<16x256xf32> to vector<1x128xf32>
    %cst_38 = arith.constant 9.99999974E-6 : f32
    %110 = vector.broadcast %cst_38 : f32 to vector<1x128xf32>
    %111 = arith.addf %107, %110 : vector<1x128xf32>
    %112 = math.rsqrt %111 : vector<1x128xf32>
    %113 = arith.mulf %108, %112 : vector<1x128xf32>
    %114 = arith.mulf %98, %113 : vector<1x128xf32>
    %115 = arith.subf %109, %114 : vector<1x128xf32>
    %116 = vector.broadcast %113 : vector<1x128xf32> to vector<8x128xf32>
    %117 = arith.mulf %94, %116 : vector<8x128xf32>
    %118 = vector.broadcast %115 : vector<1x128xf32> to vector<8x128xf32>
    %119 = arith.addf %117, %118 : vector<8x128xf32>
    %cst_39 = arith.constant 0.000000e+00 : f32
    %120 = vector.broadcast %cst_39 : f32 to vector<8x128xf32>
    %121 = arith.maximumf %119, %120 : vector<8x128xf32>
    %122 = arith.truncf %121 : vector<8x128xf32> to vector<8x128xbf16>
    %c512 = arith.constant 512 : index
    %c0_40 = arith.constant 0 : index
    %123 = vector.load %arg5[%c512, %c0_40] : memref<640x128xbf16, #tpu.memory_space<vmem>>, vector<128x128xbf16>
    %cst_41 = arith.constant dense<0.000000e+00> : vector<8x128xf32>
    %124 = tpu.matmul %122, %123, %cst_41 {dimension_numbers = #tpu.dot_dimension_numbers<[1], [0], [0], [1], [0, 0, 1, 1], [], []>} : vector<8x128xbf16>, vector<128x128xbf16>, vector<8x128xf32> -> vector<8x128xf32>
    %125 = vector.extract_strided_slice %0 {offsets = [8, 0], sizes = [1, 128], strides = [1, 1]} : vector<16x256xf32> to vector<1x128xf32>
    %126 = vector.broadcast %125 : vector<1x128xf32> to vector<8x128xf32>
    %127 = arith.addf %124, %126 : vector<8x128xf32>
    %c0_42 = arith.constant 0 : index
    %c0_43 = arith.constant 0 : index
    %128 = vector.load %arg4[%c0_42, %c0_43] : memref<8x128xf32, #tpu.memory_space<vmem>>, vector<8x128xf32>
    tpu.vector_store %arg4[%c0_42, %c0_43], %127 {strides = array<i32>} : memref<8x128xf32, #tpu.memory_space<vmem>>, vector<8x128xf32>,
    return
  }
}

</mosaic_0001>

<llo_original>
// kernel: tpu_custom_call.1
$region0: #{tpu_custom_call.1}
  #allocation0 [shape = 'u32[]', space=smem, size = 0x4, offset = 0x4, fixed_abs, tag = 'smem constant byte address 0x4 - core index']
  #allocation1 [shape = 'u32[72,128]{1,0:T(1,128)}', space=vmem, size = 0x9000, scoped, tag = 'internal scratch']
  #allocation2 [shape = 'bf16[640,128]{1,0:T(8,128)(2,1)}', space=vmem, size = 0x28000, scoped, tag = 'scratch operand']
  #allocation3 [shape = 's32[1]{0}', space=sflag, size = 0x4, scoped, tag = 'scratch operand']
  #allocation11 [shape = 's32[]', space=sflag, size = 0x4, offset = 0, fixed_abs, tag = 'sflag constant byte address 0x0 - dummy sync flag']
  #allocation12 [shape = 's32[]', space=sflag, size = 0x4, offset = 0, fixed_abs, tag = 'sflag constant byte address 0x0 - dummy sync flag']
  #allocation13 [shape = 'u32[]', space=smem, size = 0x4, offset = 0x44, fixed_abs, tag = 'smem constant byte address 0x44 - assertion arg 0']
  #allocation14 [shape = 'u32[]', space=smem, size = 0x4, offset = 0x48, fixed_abs, tag = 'smem constant byte address 0x48 - assertion arg 1']
  %s0 = inlined_call_operand.hbm [shape: f32[8,32], index: 0, kind: input, shape index: {}]
  %s1 = inlined_call_operand.hbm [shape: bf16[32,256], index: 1, kind: input, shape index: {}]
  %s2 = inlined_call_operand.hbm [shape: bf16[640,128], index: 2, kind: input, shape index: {}]
  %s3 = inlined_call_operand.hbm [shape: f32[16,256], index: 3, kind: input, shape index: {}]
  %s4 = inlined_call_operand.hbm [shape: f32[8,128], index: 4, kind: output, shape index: {}]
  %s5 = sld [smem:[#allocation0]]
  $region38: #{tpu_custom_call.1} parent=0
    _
  %s7 = ssub.s32 1, %s5
  %s8 = scalar_select 0, %s7, %s5
  $region1: #{tpu_custom_call.1} parent=0
    #allocation4 [shape = 'u8[4096]{0}', space=vmem, size = 0x1000, scoped, tag = 'input window, operand 0, single buffered']
    #allocation5 [shape = 's32[1]{0}', space=sflag, size = 0x4, scoped, tag = 'scoped memory for tpu_custom_call.1']
    #allocation6 [shape = 's32[1]{0}', space=sflag, size = 0x4, scoped, tag = 'scoped memory for tpu_custom_call.1']
    #allocation7 [shape = 'u8[16384]{0}', space=vmem, size = 0x4000, scoped, tag = 'input window, operand 1, single buffered']
    #allocation8 [shape = 's32[1]{0}', space=sflag, size = 0x4, scoped, tag = 'scoped memory for tpu_custom_call.1']
    #allocation9 [shape = 'u8[16384]{0}', space=vmem, size = 0x4000, scoped, tag = 'input window, operand 3, single buffered']
    #allocation10 [shape = 'u8[4096]{0}', space=vmem, size = 0x1000, scoped, tag = 'output window, operand 0, single buffered']
    %9 = vsyncpa [#allocation5], 0
    %10 = vsyncpa [#allocation8], 0
    %11 = vsyncpa [#allocation6], 0
    // Predicated region
    $region2: #{tpu_custom_call.1} parent=1 // pred_check
      _
    $region3: #{tpu_custom_call.1} parent=1 // pred_check_branch
      %13 = sbr.rel (0) target = $region5
    $region4: #{tpu_custom_call.1} parent=1 // pred_region
      %15 = vsyncadd [#allocation5], 0
      %s17 = sshll.u32 %s0, 4
      %s18 = int_to_ptr.hbm [resolvable:$true] %s17
      %s19 = sshll.u32 [#allocation4], 4
      %s20 = int_to_ptr.vmem [resolvable:$true] %s19
      %22 = dma.hbm_to_vmem [thread:$0]  %s18, 128, %s20, [#allocation5]
    $region5: #{tpu_custom_call.1} parent=1 // pred_fallthru
      _
    // Predicated region
    $region6: #{tpu_custom_call.1} parent=1 // pred_check
      _
    $region7: #{tpu_custom_call.1} parent=1 // pred_check_branch
      %24 = sbr.rel (0) target = $region9
    $region8: #{tpu_custom_call.1} parent=1 // pred_region
      %26 = vsyncadd [#allocation8], 0
      %s27 = sshll.u32 %s1, 4
      %s28 = int_to_ptr.hbm [resolvable:$true] %s27
      %s29 = sshll.u32 [#allocation7], 4
      %s30 = int_to_ptr.vmem [resolvable:$true] %s29
      %35 = dma.hbm_to_vmem [thread:$0]  %s28, 512, %s30, [#allocation8], 128, 128, 8
    $region9: #{tpu_custom_call.1} parent=1 // pred_fallthru
      _
    // Predicated region
    $region10: #{tpu_custom_call.1} parent=1 // pred_check
      _
    $region11: #{tpu_custom_call.1} parent=1 // pred_check_branch
      %37 = sbr.rel (0) target = $region13
    $region12: #{tpu_custom_call.1} parent=1 // pred_region
      %39 = vsyncadd [#allocation8], 0
      %s40 = sshll.u32 %s3, 4
      %s41 = int_to_ptr.hbm [resolvable:$true] %s40
      %s42 = sshll.u32 [#allocation9], 4
      %s43 = int_to_ptr.vmem [resolvable:$true] %s42
      %48 = dma.hbm_to_vmem [thread:$0]  %s41, 512, %s43, [#allocation8], 256, 256, 16
    $region13: #{tpu_custom_call.1} parent=1 // pred_fallthru
      _
    // Predicated region
    $region14: #{tpu_custom_call.1} parent=1 // pred_check
      _
    $region15: #{tpu_custom_call.1} parent=1 // pred_check_branch
      %50 = sbr.rel (0) target = $region17
    $region16: #{tpu_custom_call.1} parent=1 // pred_region
      %52 = dma.done [#allocation5], 128
    $region17: #{tpu_custom_call.1} parent=1 // pred_fallthru
      _
    // Predicated region
    $region18: #{tpu_custom_call.1} parent=1 // pred_check
      _
    $region19: #{tpu_custom_call.1} parent=1 // pred_check_branch
      %54 = sbr.rel (0) target = $region21
    $region20: #{tpu_custom_call.1} parent=1 // pred_region
      %56 = dma.done [#allocation8], 512
    $region21: #{tpu_custom_call.1} parent=1 // pred_fallthru
      _
    // Predicated region
    $region22: #{tpu_custom_call.1} parent=1 // pred_check
      _
    $region23: #{tpu_custom_call.1} parent=1 // pred_check_branch
      %58 = sbr.rel (0) target = $region25
    $region24: #{tpu_custom_call.1} parent=1 // pred_region
      %60 = dma.done [#allocation8], 512
    $region25: #{tpu_custom_call.1} parent=1 // pred_fallthru
      _
    // Predicated region
    $region26: #{tpu_custom_call.1} parent=1 // pred_check
      _
    $region27: #{tpu_custom_call.1} parent=1 // pred_check_branch
      %63 = sbr.rel target = $region29
    $region28: #{tpu_custom_call.1} parent=1 // pred_region
      %64 = sst [smem:[#allocation13]] [#allocation12]
      %65 = sst [smem:[#allocation14]] [#allocation11]
    $region29: #{tpu_custom_call.1} parent=1 // pred_fallthru
      _
    %67 = shalt.err (0)
    %s69 = sshll.u32 %s2, 4
    %s70 = int_to_ptr.hbm [resolvable:$true] %s69
    %s71 = sshll.u32 [#allocation2], 4
    %s72 = int_to_ptr.vmem [resolvable:$true] %s71
    %74 = dma.hbm_to_vmem [thread:$0]  %s70, 5120, %s72, [#allocation3]
    %v75 = vld [vmem:[#allocation9] sm:$0xff]
    %v76 = vld [vmem:[#allocation9 + $0x8] sm:$0xff]
    %v77 = vld [vmem:[#allocation9 + $0x10] sm:$0xff]
    %v78 = vld [vmem:[#allocation4] sm:$0xff]
    %v79 = vpack.c.bf16 %v78, %v78
    %v80 = vld [vmem:[#allocation7] sm:$0xff]
    %v81 = vld [vmem:[#allocation7 + $0x8] sm:$0xff]
    %v82 = vld [vmem:[#allocation7 + $0x10] sm:$0xff]
    %v83 = vld [vmem:[#allocation7 + $0x18] sm:$0xff]
    %v88 = vunpack.c.l.b16 %v80
    %v89 = vunpack.c.h.b16 %v80
    %v90 = vunpack.c.l.b16 %v81
    %v91 = vunpack.c.h.b16 %v81
    %v92 = vunpack.c.l.b16 %v82
    %v93 = vunpack.c.h.b16 %v82
    %v94 = vunpack.c.l.b16 %v83
    %v95 = vunpack.c.h.b16 %v83
    %v96 = vpack.c.b16 %v90, %v88
    %v97 = vpack.c.b16 %v91, %v89
    %v98 = vpack.c.b16 %v94, %v92
    %v99 = vpack.c.b16 %v95, %v93
    %vm104 = vcmask 261120
    %v106 = vsel %vm104, %v79, 0
    %108 = vmatpush.bf16.msra.mxu0 0
    %109 = vmatpush.bf16.msra.mxu0 0
    %110 = vmatpush.bf16.msra.mxu0 0
    %111 = vmatpush.bf16.msra.mxu0 0
    %112 = vmatpush.bf16.msra.mxu0 0
    %113 = vmatpush.bf16.msra.mxu0 0
    %114 = vmatpush.bf16.msra.mxu0 %v98
    %115 = vmatpush.bf16.msra.mxu0 %v96
    %116 = vmatmul.bf16.gmra.mxu0 %v106
    %v117 = vpop.f32.mrf.mxu0
    %v118 = vadd.f32 0.0, %v117
    %v119 = vpop.f32.mrf.mxu0
    %120 = vdwg.mxu0
    %121 = vmatpush.bf16.msra.mxu0 0
    %122 = vmatpush.bf16.msra.mxu0 0
    %123 = vmatpush.bf16.msra.mxu0 0
    %124 = vmatpush.bf16.msra.mxu0 0
    %125 = vmatpush.bf16.msra.mxu0 0
    %126 = vmatpush.bf16.msra.mxu0 0
    %127 = vmatpush.bf16.msra.mxu0 %v99
    %128 = vmatpush.bf16.msra.mxu0 %v97
    %129 = vmatmul.bf16.gmra.mxu0 %v106
    %v130 = vpop.f32.mrf.mxu0
    %v131 = vadd.f32 0.0, %v130
    %v132 = vpop.f32.mrf.mxu0
    %133 = vdwg.mxu0
    %v134 = vrot.slane %v118, 4
    %v135 = vadd.f32 %v118, %v134
    %v136 = vrot.slane %v135, 2
    %v137 = vadd.f32 %v135, %v136
    %v138 = vrot.slane %v137, 1
    %v139 = vadd.f32 %v137, %v138
    %v140 = vrot.slane %v131, 4
    %v141 = vadd.f32 %v131, %v140
    %v142 = vrot.slane %v141, 2
    %v143 = vadd.f32 %v141, %v142
    %v144 = vrot.slane %v143, 1
    %v145 = vadd.f32 %v143, %v144
    %v146 = vrcp.pop 8.0
    %v147 = vmul.f32 8.0, %v146
    %v148 = vsub.f32 1.0, %v147
    %v149 = vmul.f32 %v146, %v148
    %v150 = vadd.f32 %v146, %v149
    %vm151 = vweird.f32 %v146
    %v152 = vsel %vm151, %v146, %v150
    %v153 = vmul.f32 %v139, %v152
    %v154 = vmul.f32 %v145, %v152
    %v155 = vmul.f32 %v118, %v118
    %v156 = vmul.f32 %v131, %v131
    %v157 = vrot.slane %v155, 4
    %v158 = vadd.f32 %v155, %v157
    %v159 = vrot.slane %v158, 2
    %v160 = vadd.f32 %v158, %v159
    %v161 = vrot.slane %v160, 1
    %v162 = vadd.f32 %v160, %v161
    %v163 = vrot.slane %v156, 4
    %v164 = vadd.f32 %v156, %v163
    %v165 = vrot.slane %v164, 2
    %v166 = vadd.f32 %v164, %v165
    %v167 = vrot.slane %v166, 1
    %v168 = vadd.f32 %v166, %v167
    %v169 = vmul.f32 %v162, %v152
    %v170 = vmul.f32 %v168, %v152
    %v171 = vmul.f32 %v153, %v153
    %v172 = vmul.f32 %v154, %v154
    %v173 = vsub.f32 %v169, %v171
    %v174 = vsub.f32 %v170, %v172
    %v175 = vmax.f32 %v173, 0.0
    %v176 = vmax.f32 %v174, 0.0
    %v177 = vadd.f32 %v175, 1e-05
    %v178 = vadd.f32 %v176, 1e-05
    %v179 = vrsqrt.pop %v177
    %v180 = vmul.f32 %v179, %v177
    %v181 = vmul.f32 %v180, %v179
    %v182 = vmul.f32 0.5, %v181
    %v183 = vsub.f32 1.5, %v182
    %v184 = vmul.f32 %v179, %v183
    %vm185 = vweird.f32 %v177
    %vm186 = vweird.f32 %v179
    %vm187 = vmor %vm185, %vm186
    %v188 = vsel %vm187, %v179, %v184
    %v189 = vrsqrt.pop %v178
    %v190 = vmul.f32 %v189, %v178
    %v191 = vmul.f32 %v190, %v189
    %v192 = vmul.f32 0.5, %v191
    %v193 = vsub.f32 1.5, %v192
    %v194 = vmul.f32 %v189, %v193
    %vm195 = vweird.f32 %v178
    %vm196 = vweird.f32 %v189
    %vm197 = vmor %vm195, %vm196
    %v198 = vsel %vm197, %v189, %v194
    %v199 = vmul.f32 %v75, %v188
    %v200 = vmul.f32 %v76, %v198
    %v201 = vmul.f32 %v153, %v199
    %v202 = vmul.f32 %v154, %v200
    %v205 = vrot.slane %v201, 7
    %v206 = vrot.slane %v202, 7
    %v209 = vsub.f32 %v75, %v205
    %v210 = vsub.f32 %v76, %v206
    %v211 = vperm.slane %v199, 0
    %v212 = vperm.slane %v200, 0
    %v213 = vmul.f32 %v118, %v211
    %v214 = vmul.f32 %v131, %v212
    %v215 = vperm.slane %v209, 1
    %v216 = vperm.slane %v210, 1
    %v217 = vadd.f32 %v213, %v215
    %v218 = vadd.f32 %v214, %v216
    %v219 = vmax.f32 %v217, 0.0
    %v220 = vmax.f32 %v218, 0.0
    %s221 = smul.u32 4, 80
    %s222 = smul.u32 %s221, 1
    %s223 = sshll.u32 %s222, 4
    %224 = dma.done [#allocation3], %s223
    %v225 = vpack.c.bf16 %v219, %v219
    %v226 = vpack.c.bf16 %v220, %v220
    %v227 = vld [vmem:[#allocation2] sm:$0xf]
    %v228 = vld [vmem:[#allocation2 + $0x4] sm:$0xf]
    %v229 = vld [vmem:[#allocation2 + $0x8] sm:$0xf]
    %v230 = vld [vmem:[#allocation2 + $0xc] sm:$0xf]
    %v231 = vld [vmem:[#allocation2 + $0x10] sm:$0xf]
    %v232 = vld [vmem:[#allocation2 + $0x14] sm:$0xf]
    %v233 = vld [vmem:[#allocation2 + $0x18] sm:$0xf]
    %v234 = vld [vmem:[#allocation2 + $0x1c] sm:$0xf]
    %v235 = vld [vmem:[#allocation2 + $0x20] sm:$0xf]
    %v236 = vld [vmem:[#allocation2 + $0x24] sm:$0xf]
    %v237 = vld [vmem:[#allocation2 + $0x28] sm:$0xf]
    %v238 = vld [vmem:[#allocation2 + $0x2c] sm:$0xf]
    %v239 = vld [vmem:[#allocation2 + $0x30] sm:$0xf]
    %v240 = vld [vmem:[#allocation2 + $0x34] sm:$0xf]
    %v241 = vld [vmem:[#allocation2 + $0x38] sm:$0xf]
    %v242 = vld [vmem:[#allocation2 + $0x3c] sm:$0xf]
    %v243 = vld [vmem:[#allocation2 + $0x40] sm:$0xf]
    %v244 = vld [vmem:[#allocation2 + $0x44] sm:$0xf]
    %v245 = vld [vmem:[#allocation2 + $0x48] sm:$0xf]
    %v246 = vld [vmem:[#allocation2 + $0x4c] sm:$0xf]
    %v247 = vld [vmem:[#allocation2 + $0x50] sm:$0xf]
    %v248 = vld [vmem:[#allocation2 + $0x54] sm:$0xf]
    %v249 = vld [vmem:[#allocation2 + $0x58] sm:$0xf]
    %v250 = vld [vmem:[#allocation2 + $0x5c] sm:$0xf]
    %v251 = vld [vmem:[#allocation2 + $0x60] sm:$0xf]
    %v252 = vld [vmem:[#allocation2 + $0x64] sm:$0xf]
    %v253 = vld [vmem:[#allocation2 + $0x68] sm:$0xf]
    %v254 = vld [vmem:[#allocation2 + $0x6c] sm:$0xf]
    %v255 = vld [vmem:[#allocation2 + $0x70] sm:$0xf]
    %v256 = vld [vmem:[#allocation2 + $0x74] sm:$0xf]
    %v257 = vld [vmem:[#allocation2 + $0x78] sm:$0xf]
    %v258 = vld [vmem:[#allocation2 + $0x7c] sm:$0xf]
    %v291 = vunpack.c.l.b16 %v227
    %v292 = vunpack.c.l.b16 %v228
    %v293 = vunpack.c.l.b16 %v229
    %v294 = vunpack.c.l.b16 %v230
    %v295 = vunpack.c.l.b16 %v231
    %v296 = vunpack.c.l.b16 %v232
    %v297 = vunpack.c.l.b16 %v233
    %v298 = vunpack.c.l.b16 %v234
    %v299 = vunpack.c.l.b16 %v235
    %v300 = vunpack.c.l.b16 %v236
    %v301 = vunpack.c.l.b16 %v237
    %v302 = vunpack.c.l.b16 %v238
    %v303 = vunpack.c.l.b16 %v239
    %v304 = vunpack.c.l.b16 %v240
    %v305 = vunpack.c.l.b16 %v241
    %v306 = vunpack.c.l.b16 %v242
    %v307 = vunpack.c.l.b16 %v243
    %v308 = vunpack.c.l.b16 %v244
    %v309 = vunpack.c.l.b16 %v245
    %v310 = vunpack.c.l.b16 %v246
    %v311 = vunpack.c.l.b16 %v247
    %v312 = vunpack.c.l.b16 %v248
    %v313 = vunpack.c.l.b16 %v249
    %v314 = vunpack.c.l.b16 %v250
    %v315 = vunpack.c.l.b16 %v251
    %v316 = vunpack.c.l.b16 %v252
    %v317 = vunpack.c.l.b16 %v253
    %v318 = vunpack.c.l.b16 %v254
    %v319 = vunpack.c.l.b16 %v255
    %v320 = vunpack.c.l.b16 %v256
    %v321 = vunpack.c.l.b16 %v257
    %v322 = vunpack.c.l.b16 %v258
    %v323 = vpack.c.b16 %v292, %v291
    %v324 = vpack.c.b16 %v294, %v293
    %v325 = vpack.c.b16 %v296, %v295
    %v326 = vpack.c.b16 %v298, %v297
    %v327 = vpack.c.b16 %v300, %v299
    %v328 = vpack.c.b16 %v302, %v301
    %v329 = vpack.c.b16 %v304, %v303
    %v330 = vpack.c.b16 %v306, %v305
    %v331 = vpack.c.b16 %v308, %v307
    %v332 = vpack.c.b16 %v310, %v309
    %v333 = vpack.c.b16 %v312, %v311
    %v334 = vpack.c.b16 %v314, %v313
    %v335 = vpack.c.b16 %v316, %v315
    %v336 = vpack.c.b16 %v318, %v317
    %v337 = vpack.c.b16 %v320, %v319
    %v338 = vpack.c.b16 %v322, %v321
    %355 = vmatpush.bf16.msra.mxu0 %v330
    %356 = vmatpush.bf16.msra.mxu0 %v329
    %357 = vmatpush.bf16.msra.mxu0 %v328
    %358 = vmatpush.bf16.msra.mxu0 %v327
    %359 = vmatpush.bf16.msra.mxu0 %v326
    %360 = vmatpush.bf16.msra.mxu0 %v325
    %361 = vmatpush.bf16.msra.mxu0 %v324
    %362 = vmatpush.bf16.msra.mxu0 %v323
    %363 = vmatmul.bf16.gmra.mxu0 %v225
    %v364 = vpop.f32.mrf.mxu0
    %v365 = vadd.f32 0.0, %v364
    %v366 = vpop.f32.mrf.mxu0
    %367 = vdwg.mxu0
    %368 = vmatpush.bf16.msra.mxu0 %v338
    %369 = vmatpush.bf16.msra.mxu0 %v337
    %370 = vmatpush.bf16.msra.mxu0 %v336
    %371 = vmatpush.bf16.msra.mxu0 %v335
    %372 = vmatpush.bf16.msra.mxu0 %v334
    %373 = vmatpush.bf16.msra.mxu0 %v333
    %374 = vmatpush.bf16.msra.mxu0 %v332
    %375 = vmatpush.bf16.msra.mxu0 %v331
    %376 = vmatmul.bf16.gmra.mxu0 %v226
    %v377 = vpop.f32.mrf.mxu0
    %v378 = vadd.f32 %v365, %v377
    %v379 = vpop.f32.mrf.mxu0
    %380 = vdwg.mxu0
    %v381 = vrot.slane %v378, 4
    %v382 = vadd.f32 %v378, %v381
    %v383 = vrot.slane %v382, 2
    %v384 = vadd.f32 %v382, %v383
    %v385 = vrot.slane %v384, 1
    %v386 = vadd.f32 %v384, %v385
    %v387 = vmul.f32 %v386, %v152
    %v388 = vmul.f32 %v378, %v378
    %v389 = vrot.slane %v388, 4
    %v390 = vadd.f32 %v388, %v389
    %v391 = vrot.slane %v390, 2
    %v392 = vadd.f32 %v390, %v391
    %v393 = vrot.slane %v392, 1
    %v394 = vadd.f32 %v392, %v393
    %v395 = vmul.f32 %v394, %v152
    %v396 = vmul.f32 %v387, %v387
    %v397 = vsub.f32 %v395, %v396
    %v398 = vmax.f32 %v397, 0.0
    %v399 = vadd.f32 %v398, 1e-05
    %v400 = vrsqrt.pop %v399
    %v401 = vmul.f32 %v400, %v399
    %v402 = vmul.f32 %v401, %v400
    %v403 = vmul.f32 0.5, %v402
    %v404 = vsub.f32 1.5, %v403
    %v405 = vmul.f32 %v400, %v404
    %vm406 = vweird.f32 %v399
    %vm407 = vweird.f32 %v400
    %vm408 = vmor %vm406, %vm407
    %v409 = vsel %vm408, %v400, %v405
    %v410 = vmul.f32 %v75, %v409
    %v411 = vmul.f32 %v387, %v410
    %v413 = vrot.slane %v411, 7
    %v415 = vsub.f32 %v75, %v413
    %v416 = vperm.slane %v410, 2
    %v417 = vmul.f32 %v378, %v416
    %v418 = vperm.slane %v415, 3
    %v419 = vadd.f32 %v417, %v418
    %v420 = vmax.f32 %v419, 0.0
    %v421 = vpack.c.bf16 %v420, %v420
    %v422 = vld [vmem:[#allocation2 + $0x80] sm:$0xf]
    %v423 = vld [vmem:[#allocation2 + $0x84] sm:$0xf]
    %v424 = vld [vmem:[#allocation2 + $0x88] sm:$0xf]
    %v425 = vld [vmem:[#allocation2 + $0x8c] sm:$0xf]
    %v426 = vld [vmem:[#allocation2 + $0x90] sm:$0xf]
    %v427 = vld [vmem:[#allocation2 + $0x94] sm:$0xf]
    %v428 = vld [vmem:[#allocation2 + $0x98] sm:$0xf]
    %v429 = vld [vmem:[#allocation2 + $0x9c] sm:$0xf]
    %v430 = vld [vmem:[#allocation2 + $0xa0] sm:$0xf]
    %v431 = vld [vmem:[#allocation2 + $0xa4] sm:$0xf]
    %v432 = vld [vmem:[#allocation2 + $0xa8] sm:$0xf]
    %v433 = vld [vmem:[#allocation2 + $0xac] sm:$0xf]
    %v434 = vld [vmem:[#allocation2 + $0xb0] sm:$0xf]
    %v435 = vld [vmem:[#allocation2 + $0xb4] sm:$0xf]
    %v436 = vld [vmem:[#allocation2 + $0xb8] sm:$0xf]
    %v437 = vld [vmem:[#allocation2 + $0xbc] sm:$0xf]
    %v454 = vunpack.c.l.b16 %v422
    %v455 = vunpack.c.l.b16 %v423
    %v456 = vunpack.c.l.b16 %v424
    %v457 = vunpack.c.l.b16 %v425
    %v458 = vunpack.c.l.b16 %v426
    %v459 = vunpack.c.l.b16 %v427
    %v460 = vunpack.c.l.b16 %v428
    %v461 = vunpack.c.l.b16 %v429
    %v462 = vunpack.c.l.b16 %v430
    %v463 = vunpack.c.l.b16 %v431
    %v464 = vunpack.c.l.b16 %v432
    %v465 = vunpack.c.l.b16 %v433
    %v466 = vunpack.c.l.b16 %v434
    %v467 = vunpack.c.l.b16 %v435
    %v468 = vunpack.c.l.b16 %v436
    %v469 = vunpack.c.l.b16 %v437
    %v470 = vpack.c.b16 %v455, %v454
    %v471 = vpack.c.b16 %v457, %v456
    %v472 = vpack.c.b16 %v459, %v458
    %v473 = vpack.c.b16 %v461, %v460
    %v474 = vpack.c.b16 %v463, %v462
    %v475 = vpack.c.b16 %v465, %v464
    %v476 = vpack.c.b16 %v467, %v466
    %v477 = vpack.c.b16 %v469, %v468
    %486 = vmatpush.bf16.msra.mxu0 %v477
    %487 = vmatpush.bf16.msra.mxu0 %v476
    %488 = vmatpush.bf16.msra.mxu0 %v475
    %489 = vmatpush.bf16.msra.mxu0 %v474
    %490 = vmatpush.bf16.msra.mxu0 %v473
    %491 = vmatpush.bf16.msra.mxu0 %v472
    %492 = vmatpush.bf16.msra.mxu0 %v471
    %493 = vmatpush.bf16.msra.mxu0 %v470
    %494 = vmatmul.bf16.gmra.mxu0 %v421
    %v495 = vpop.f32.mrf.mxu0
    %v496 = vadd.f32 0.0, %v495
    %v497 = vpop.f32.mrf.mxu0
    %498 = vdwg.mxu0
    %v499 = vrot.slane %v496, 4
    %v500 = vadd.f32 %v496, %v499
    %v501 = vrot.slane %v500, 2
    %v502 = vadd.f32 %v500, %v501
    %v503 = vrot.slane %v502, 1
    %v504 = vadd.f32 %v502, %v503
    %v505 = vmul.f32 %v504, %v152
    %v506 = vmul.f32 %v496, %v496
    %v507 = vrot.slane %v506, 4
    %v508 = vadd.f32 %v506, %v507
    %v509 = vrot.slane %v508, 2
    %v510 = vadd.f32 %v508, %v509
    %v511 = vrot.slane %v510, 1
    %v512 = vadd.f32 %v510, %v511
    %v513 = vmul.f32 %v512, %v152
    %v514 = vmul.f32 %v505, %v505
    %v515 = vsub.f32 %v513, %v514
    %v516 = vmax.f32 %v515, 0.0
    %v517 = vadd.f32 %v516, 1e-05
    %v518 = vrsqrt.pop %v517
    %v519 = vmul.f32 %v518, %v517
    %v520 = vmul.f32 %v519, %v518
    %v521 = vmul.f32 0.5, %v520
    %v522 = vsub.f32 1.5, %v521
    %v523 = vmul.f32 %v518, %v522
    %vm524 = vweird.f32 %v517
    %vm525 = vweird.f32 %v518
    %vm526 = vmor %vm524, %vm525
    %v527 = vsel %vm526, %v518, %v523
    %v528 = vmul.f32 %v75, %v527
    %v529 = vmul.f32 %v505, %v528
    %v531 = vrot.slane %v529, 7
    %v533 = vsub.f32 %v75, %v531
    %v534 = vperm.slane %v528, 4
    %v535 = vmul.f32 %v496, %v534
    %v536 = vperm.slane %v533, 5
    %v537 = vadd.f32 %v535, %v536
    %v538 = vmax.f32 %v537, 0.0
    %v539 = vpack.c.bf16 %v538, %v538
    %v540 = vld [vmem:[#allocation2 + $0xc0] sm:$0xf]
    %v541 = vld [vmem:[#allocation2 + $0xc4] sm:$0xf]
    %v542 = vld [vmem:[#allocation2 + $0xc8] sm:$0xf]
    %v543 = vld [vmem:[#allocation2 + $0xcc] sm:$0xf]
    %v544 = vld [vmem:[#allocation2 + $0xd0] sm:$0xf]
    %v545 = vld [vmem:[#allocation2 + $0xd4] sm:$0xf]
    %v546 = vld [vmem:[#allocation2 + $0xd8] sm:$0xf]
    %v547 = vld [vmem:[#allocation2 + $0xdc] sm:$0xf]
    %v548 = vld [vmem:[#allocation2 + $0xe0] sm:$0xf]
    %v549 = vld [vmem:[#allocation2 + $0xe4] sm:$0xf]
    %v550 = vld [vmem:[#allocation2 + $0xe8] sm:$0xf]
    %v551 = vld [vmem:[#allocation2 + $0xec] sm:$0xf]
    %v552 = vld [vmem:[#allocation2 + $0xf0] sm:$0xf]
    %v553 = vld [vmem:[#allocation2 + $0xf4] sm:$0xf]
    %v554 = vld [vmem:[#allocation2 + $0xf8] sm:$0xf]
    %v555 = vld [vmem:[#allocation2 + $0xfc] sm:$0xf]
    %v572 = vunpack.c.l.b16 %v540
    %v573 = vunpack.c.l.b16 %v541
    %v574 = vunpack.c.l.b16 %v542
    %v575 = vunpack.c.l.b16 %v543
    %v576 = vunpack.c.l.b16 %v544
    %v577 = vunpack.c.l.b16 %v545
    %v578 = vunpack.c.l.b16 %v546
    %v579 = vunpack.c.l.b16 %v547
    %v580 = vunpack.c.l.b16 %v548
    %v581 = vunpack.c.l.b16 %v549
    %v582 = vunpack.c.l.b16 %v550
    %v583 = vunpack.c.l.b16 %v551
    %v584 = vunpack.c.l.b16 %v552
    %v585 = vunpack.c.l.b16 %v553
    %v586 = vunpack.c.l.b16 %v554
    %v587 = vunpack.c.l.b16 %v555
    %v588 = vpack.c.b16 %v573, %v572
    %v589 = vpack.c.b16 %v575, %v574
    %v590 = vpack.c.b16 %v577, %v576
    %v591 = vpack.c.b16 %v579, %v578
    %v592 = vpack.c.b16 %v581, %v580
    %v593 = vpack.c.b16 %v583, %v582
    %v594 = vpack.c.b16 %v585, %v584
    %v595 = vpack.c.b16 %v587, %v586
    %604 = vmatpush.bf16.msra.mxu0 %v595
    %605 = vmatpush.bf16.msra.mxu0 %v594
    %606 = vmatpush.bf16.msra.mxu0 %v593
    %607 = vmatpush.bf16.msra.mxu0 %v592
    %608 = vmatpush.bf16.msra.mxu0 %v591
    %609 = vmatpush.bf16.msra.mxu0 %v590
    %610 = vmatpush.bf16.msra.mxu0 %v589
    %611 = vmatpush.bf16.msra.mxu0 %v588
    %612 = vmatmul.bf16.gmra.mxu0 %v539
    %v613 = vpop.f32.mrf.mxu0
    %v614 = vadd.f32 0.0, %v613
    %v615 = vpop.f32.mrf.mxu0
    %616 = vdwg.mxu0
    %v617 = vrot.slane %v614, 4
    %v618 = vadd.f32 %v614, %v617
    %v619 = vrot.slane %v618, 2
    %v620 = vadd.f32 %v618, %v619
    %v621 = vrot.slane %v620, 1
    %v622 = vadd.f32 %v620, %v621
    %v623 = vmul.f32 %v622, %v152
    %v624 = vmul.f32 %v614, %v614
    %v625 = vrot.slane %v624, 4
    %v626 = vadd.f32 %v624, %v625
    %v627 = vrot.slane %v626, 2
    %v628 = vadd.f32 %v626, %v627
    %v629 = vrot.slane %v628, 1
    %v630 = vadd.f32 %v628, %v629
    %v631 = vmul.f32 %v630, %v152
    %v632 = vmul.f32 %v623, %v623
    %v633 = vsub.f32 %v631, %v632
    %v634 = vmax.f32 %v633, 0.0
    %v635 = vadd.f32 %v634, 1e-05
    %v636 = vrsqrt.pop %v635
    %v637 = vmul.f32 %v636, %v635
    %v638 = vmul.f32 %v637, %v636
    %v639 = vmul.f32 0.5, %v638
    %v640 = vsub.f32 1.5, %v639
    %v641 = vmul.f32 %v636, %v640
    %vm642 = vweird.f32 %v635
    %vm643 = vweird.f32 %v636
    %vm644 = vmor %vm642, %vm643
    %v645 = vsel %vm644, %v636, %v641
    %v646 = vmul.f32 %v75, %v645
    %v647 = vmul.f32 %v623, %v646
    %v649 = vrot.slane %v647, 7
    %v651 = vsub.f32 %v75, %v649
    %v652 = vperm.slane %v646, 6
    %v653 = vmul.f32 %v614, %v652
    %v654 = vperm.slane %v651, 7
    %v655 = vadd.f32 %v653, %v654
    %v656 = vmax.f32 %v655, 0.0
    %v657 = vpack.c.bf16 %v656, %v656
    %v658 = vld [vmem:[#allocation2 + $0x100] sm:$0xf]
    %v659 = vld [vmem:[#allocation2 + $0x104] sm:$0xf]
    %v660 = vld [vmem:[#allocation2 + $0x108] sm:$0xf]
    %v661 = vld [vmem:[#allocation2 + $0x10c] sm:$0xf]
    %v662 = vld [vmem:[#allocation2 + $0x110] sm:$0xf]
    %v663 = vld [vmem:[#allocation2 + $0x114] sm:$0xf]
    %v664 = vld [vmem:[#allocation2 + $0x118] sm:$0xf]
    %v665 = vld [vmem:[#allocation2 + $0x11c] sm:$0xf]
    %v666 = vld [vmem:[#allocation2 + $0x120] sm:$0xf]
    %v667 = vld [vmem:[#allocation2 + $0x124] sm:$0xf]
    %v668 = vld [vmem:[#allocation2 + $0x128] sm:$0xf]
    %v669 = vld [vmem:[#allocation2 + $0x12c] sm:$0xf]
    %v670 = vld [vmem:[#allocation2 + $0x130] sm:$0xf]
    %v671 = vld [vmem:[#allocation2 + $0x134] sm:$0xf]
    %v672 = vld [vmem:[#allocation2 + $0x138] sm:$0xf]
    %v673 = vld [vmem:[#allocation2 + $0x13c] sm:$0xf]
    %v674 = vperm.slane %v77, 0
    %v691 = vunpack.c.l.b16 %v658
    %v692 = vunpack.c.l.b16 %v659
    %v693 = vunpack.c.l.b16 %v660
    %v694 = vunpack.c.l.b16 %v661
    %v695 = vunpack.c.l.b16 %v662
    %v696 = vunpack.c.l.b16 %v663
    %v697 = vunpack.c.l.b16 %v664
    %v698 = vunpack.c.l.b16 %v665
    %v699 = vunpack.c.l.b16 %v666
    %v700 = vunpack.c.l.b16 %v667
    %v701 = vunpack.c.l.b16 %v668
    %v702 = vunpack.c.l.b16 %v669
    %v703 = vunpack.c.l.b16 %v670
    %v704 = vunpack.c.l.b16 %v671
    %v705 = vunpack.c.l.b16 %v672
    %v706 = vunpack.c.l.b16 %v673
    %v707 = vpack.c.b16 %v692, %v691
    %v708 = vpack.c.b16 %v694, %v693
    %v709 = vpack.c.b16 %v696, %v695
    %v710 = vpack.c.b16 %v698, %v697
    %v711 = vpack.c.b16 %v700, %v699
    %v712 = vpack.c.b16 %v702, %v701
    %v713 = vpack.c.b16 %v704, %v703
    %v714 = vpack.c.b16 %v706, %v705
    %723 = vmatpush.bf16.msra.mxu0 %v714
    %724 = vmatpush.bf16.msra.mxu0 %v713
    %725 = vmatpush.bf16.msra.mxu0 %v712
    %726 = vmatpush.bf16.msra.mxu0 %v711
    %727 = vmatpush.bf16.msra.mxu0 %v710
    %728 = vmatpush.bf16.msra.mxu0 %v709
    %729 = vmatpush.bf16.msra.mxu0 %v708
    %730 = vmatpush.bf16.msra.mxu0 %v707
    %731 = vmatmul.bf16.gmra.mxu0 %v657
    %v732 = vpop.f32.mrf.mxu0
    %v733 = vadd.f32 %v674, %v732
    %v734 = vpop.f32.mrf.mxu0
    %735 = vdwg.mxu0
    %736 = vst [vmem:[#allocation10] sm:$0xff] %v733
    // Predicated region
    $region30: #{tpu_custom_call.1} parent=1 // pred_check
      _
    $region31: #{tpu_custom_call.1} parent=1 // pred_check_branch
      %738 = sbr.rel (0) target = $region33
    $region32: #{tpu_custom_call.1} parent=1 // pred_region
      %740 = vsyncadd [#allocation6], 0
      %s742 = sshll.u32 [#allocation10], 4
      %s743 = int_to_ptr.vmem [resolvable:$true] %s742
      %s744 = sshll.u32 %s4, 4
      %s745 = int_to_ptr.hbm [resolvable:$true] %s744
      %747 = dma.vmem_to_hbm [thread:$0]  %s743, 128, %s745, [#allocation6]
    $region33: #{tpu_custom_call.1} parent=1 // pred_fallthru
      _
    // Predicated region
    $region34: #{tpu_custom_call.1} parent=1 // pred_check
      _
    $region35: #{tpu_custom_call.1} parent=1 // pred_check_branch
      %749 = sbr.rel (0) target = $region37
    $region36: #{tpu_custom_call.1} parent=1 // pred_region
      %751 = dma.done [#allocation6], 128
    $region37: #{tpu_custom_call.1} parent=1 // pred_fallthru
      _
    %752 = vsyncpa [#allocation5], 1
    %753 = vsyncpa [#allocation8], 1
    %754 = vsyncpa [#allocation6], 1
  %755 = vsyncmov [#allocation3]
  %s756 = vpop.sfrf %755
  %p757 = scmp.eq.s32.totalorder %s756, 0
  %p758 = pneg %p757
  %760 = shalt.err (%p758)

</llo_original>
